<compile_context>
chip_gen: v5e
topology: v5e:2x2
jax: 0.10.0
libtpu: 0.0.40
codegen_flags: <defaults>
</compile_context>

<pallas_src>
import functools

import jax
import jax.numpy as jnp
from jax.experimental import pallas as pl
from jax.experimental.pallas import tpu as pltpu

LANE = 128     # vreg lane width
SUBLANE = 8    # vreg sublane count


def cross_kernel(x_ref, wt_ref, c_ref, beta_ref, o_ref, *, num_layers):
    """One batch tile of the collapsed cross network.

    x_ref   : (Bt, D)  VMEM  input activations tile
    wt_ref  : (D,  Lp) VMEM  stacked layer weights, transposed & lane-padded
    c_ref   : (1,  Lp) VMEM  precomputed scalars c_l = <beta_l, w_l>
    beta_ref: (1,  D)  VMEM  final constant vector beta_L = sum_l (bias_l+b_l)
    o_ref   : (Bt, D)  VMEM  output tile (float32)
    """
    x0 = x_ref[...].astype(jnp.float32)                                  # (Bt, D)

    # All per-layer row dots in one MXU matmul: d[b, l] = <x0[b], w_l>.
    d = jnp.dot(x0, wt_ref[...], preferred_element_type=jnp.float32)     # (Bt, Lp)

    lane_d = jax.lax.broadcasted_iota(jnp.int32, d.shape, 1)
    lane_c = jax.lax.broadcasted_iota(jnp.int32, c_ref.shape, 1)
    c_row = c_ref[...]                                                   # (1, Lp)

    alpha = jnp.ones((x0.shape[0], 1), jnp.float32)                      # (Bt, 1)
    for l in range(num_layers):          # num_layers is static & small (unrolled)
        d_l = jnp.sum(jnp.where(lane_d == l, d, 0.0), axis=-1, keepdims=True)      # (Bt, 1)
        c_l = jnp.sum(jnp.where(lane_c == l, c_row, 0.0), axis=-1, keepdims=True)  # (1, 1)
        alpha = alpha * (1.0 + d_l) + c_l

    o_ref[...] = (x0 * alpha + beta_ref[...]).astype(o_ref.dtype)


def _round_up(n, m):
    return ((n + m - 1) // m) * m


def _vmem_limit_bytes():
    """Scoped-VMEM limit sized against the actual part (v7x has only 64 MiB)."""
    try:
        cap = int(getattr(pltpu.get_tpu_info(), "vmem_capacity_bytes", 0))
    except Exception:
        cap = 0
    if cap <= 0:
        cap = 64 * 1024 * 1024          # conservative fallback: v7x physical VMEM
    # ~3/4 of physical: v5e/v6e (128 MiB) -> 96 MiB, v7x (64 MiB) -> 48 MiB.
    return max(16 * 1024 * 1024, min(cap * 3 // 4, 100 * 1024 * 1024))


def _pick_block_b(batch, d, num_layers, in_bytes, out_bytes, vmem_limit):
    lp = _round_up(max(num_layers, 1), LANE)
    d_lanes = _round_up(d, LANE)        # physical lane padding of the feature dim
    # Per-row live VMEM: double-buffered in/out DMA tiles + ~2 live f32 D-wide
    # temporaries (x0, pre-store result) + the (Bt, Lp) matmul result.
    per_row = (2 * d_lanes * in_bytes + 2 * d_lanes * out_bytes
               + 2 * d_lanes * 4 + lp * 4)
    fixed = 2 * (d * lp * 4 + d_lanes * 4)          # (wt + beta) double-buffered
    budget = int(vmem_limit * 0.8) - fixed

    block_b = 2048                                   # roofline plateaus ~1-2K rows
    while block_b > SUBLANE and block_b * per_row > budget:
        block_b //= 2
    block_b = min(block_b, _round_up(batch, SUBLANE))

    # 2-TC awareness (v7x): give the grid at least two balanced steps when the
    # batch allows it; costs only ~0.35 us on single-TC v5e/v6e parts.
    if batch > SUBLANE and pl.cdiv(batch, block_b) < 2:
        block_b = _round_up(pl.cdiv(batch, 2), SUBLANE)
    return max(block_b, SUBLANE)


def cross_forward(x, weight, lin_bias, bias, *, block_b=None):
    """x: (B, D); weight: (L, D); lin_bias: (L,); bias: (L, D) -> (B, D) f32."""
    B, D = x.shape
    L = weight.shape[0]
    out_dtype = jnp.float32            # module upcasts via .float()

    if L == 0:
        return x.astype(out_dtype)

    # Parameter-side prep (tiny, L x D): combined per-layer bias, the constant
    # final vector beta_L, and the L scalars c_l = <beta_l, w_l>.
    w = weight.astype(jnp.float32)                                        # (L, D)
    cb = bias.astype(jnp.float32) + lin_bias.astype(jnp.float32)[:, None]  # (L, D)
    beta_prefix = jnp.cumsum(cb, axis=0) - cb          # beta_l = sum_{j<l} cb_j
    c = jnp.sum(beta_prefix * w, axis=1)                                   # (L,)
    beta_final = jnp.sum(cb, axis=0, keepdims=True)                        # (1, D)

    Lp = _round_up(L, LANE)
    wt = jnp.pad(w.T, ((0, 0), (0, Lp - L)))                               # (D, Lp)
    c_row = jnp.pad(c[None, :], ((0, 0), (0, Lp - L)))                     # (1, Lp)

    vmem_limit = _vmem_limit_bytes()
    if block_b is None:
        block_b = _pick_block_b(B, D, L, x.dtype.itemsize,
                                jnp.dtype(out_dtype).itemsize, vmem_limit)
    block_b = max(SUBLANE, _round_up(block_b, SUBLANE))

    # No batch/feature padding of the activation: full-D blocks (legal since the
    # block equals the full array dim) and a pl.cdiv grid with a masked partial
    # last block (rows are independent, so OOB rows cannot corrupt valid rows).
    grid = (pl.cdiv(B, block_b),)

    kernel = functools.partial(cross_kernel, num_layers=L)
    out = pl.pallas_call(
        kernel,
        out_shape=jax.ShapeDtypeStruct((B, D), out_dtype),
        grid_spec=pltpu.PrefetchScalarGridSpec(
            num_scalar_prefetch=0,
            grid=grid,
            in_specs=[
                pl.BlockSpec((block_b, D), lambda b: (b, 0)),   # x tile
                pl.BlockSpec((D, Lp), lambda b: (0, 0)),        # W^T (lane-padded)
                pl.BlockSpec((1, Lp), lambda b: (0, 0)),        # c_l scalars
                pl.BlockSpec((1, D), lambda b: (0, 0)),         # beta_L row
            ],
            out_specs=pl.BlockSpec((block_b, D), lambda b: (b, 0)),
        ),
        compiler_params=pltpu.CompilerParams(
            dimension_semantics=("parallel",),
            vmem_limit_bytes=vmem_limit,
        ),
    )(x, wt, c_row, beta_final)
    return out


def cross_reference(x, weight, lin_bias, bias):
    """Literal translation of the PyTorch forward (materializes (B,D,D))."""
    x0 = x[:, :, None]                                            # (B, D, 1)
    x_l = x0
    for i in range(weight.shape[0]):
        tmp = jnp.matmul(x0, jnp.transpose(x_l, (0, 2, 1))).astype(jnp.float32)
        tmp = jnp.matmul(tmp, weight[i][:, None]) + lin_bias[i]   # Linear(D, 1)
        x_l = tmp + bias[i][:, None] + x_l
    return x_l[:, :, 0]


if __name__ == "__main__":
    B, D, L = 16, 32, 3          # batch, cross_dim, num_layers

    key = jax.random.PRNGKey(0)
    kx, kw, klb, kb = jax.random.split(key, 4)

    x = jax.random.normal(kx, (B, D), dtype=jnp.float32)
    # nn.Linear(cross_dim, 1): weight (1, D) per layer -> (L, D); bias (1,) -> (L,)
    weight = jax.random.normal(kw, (L, D), dtype=jnp.float32) * 0.1
    lin_bias = jax.random.normal(klb, (L,), dtype=jnp.float32) * 0.1
    # self.bias: (cross_dim, 1) per layer -> (L, D). Zero-initialized in the
    # module; use small non-zero values here to exercise the bias path.
    bias = jax.random.normal(kb, (L, D), dtype=jnp.float32) * 0.1

    out = jax.block_until_ready(cross_forward(x, weight, lin_bias, bias))
    ref = cross_reference(x, weight, lin_bias, bias)

    assert out.shape == (B, D) and out.dtype == jnp.float32
    assert jnp.allclose(out, ref, atol=1e-4, rtol=1e-4), "mismatch vs reference"

    print("KERNEL_OK")
</pallas_src>

<mosaic_0001>
module attributes {stable_mosaic.version = 11 : i64} {
  func.func @cross_kernel(%arg0: i32, %arg1: memref<8x32xf32, #tpu.memory_space<vmem>>, %arg2: memref<32x128xf32, #tpu.memory_space<vmem>>, %arg3: memref<1x128xf32, #tpu.memory_space<vmem>>, %arg4: memref<1x32xf32, #tpu.memory_space<vmem>>, %arg5: memref<8x32xf32, #tpu.memory_space<vmem>>) attributes {dimension_semantics = [#tpu.dimension_semantics<parallel>], iteration_bounds = array<i64: 2>, scalar_prefetch = 0 : i64, scratch_operands = 0 : i64, tpu.core_type = #tpu.core_type<tc>, window_params = [{transform_indices = @transform_0, window_bounds = array<i64: 8, 32>}, {pipeline_mode = #tpu.pipeline_mode<synchronous>, transform_indices = @transform_1, window_bounds = array<i64: 32, 128>}, {pipeline_mode = #tpu.pipeline_mode<synchronous>, transform_indices = @transform_2, window_bounds = array<i64: 1, 128>}, {pipeline_mode = #tpu.pipeline_mode<synchronous>, transform_indices = @transform_3, window_bounds = array<i64: 1, 32>}, {transform_indices = @transform_4, window_bounds = array<i64: 8, 32>}]} {
    %c0 = arith.constant 0 : index
    %c0_0 = arith.constant 0 : index
    %0 = vector.load %arg1[%c0, %c0_0] : memref<8x32xf32, #tpu.memory_space<vmem>>, vector<8x32xf32>
    %c0_1 = arith.constant 0 : index
    %c0_2 = arith.constant 0 : index
    %1 = vector.load %arg2[%c0_1, %c0_2] : memref<32x128xf32, #tpu.memory_space<vmem>>, vector<32x128xf32>
    %cst = arith.constant dense<0.000000e+00> : vector<8x128xf32>
    %2 = tpu.matmul %0, %1, %cst {dimension_numbers = #tpu.dot_dimension_numbers<[1], [0], [0], [1], [0, 0, 1, 1], [], []>} : vector<8x32xf32>, vector<32x128xf32>, vector<8x128xf32> -> vector<8x128xf32>
    %3 = tpu.iota {dimensions = array<i32: 1>} : vector<8x128xi32>
    %4 = tpu.iota {dimensions = array<i32: 1>} : vector<1x128xi32>
    %c0_3 = arith.constant 0 : index
    %c0_4 = arith.constant 0 : index
    %5 = vector.load %arg3[%c0_3, %c0_4] : memref<1x128xf32, #tpu.memory_space<vmem>>, vector<1x128xf32>
    %cst_5 = arith.constant 1.000000e+00 : f32
    %6 = vector.broadcast %cst_5 : f32 to vector<8x1xf32>
    %c0_i32 = arith.constant 0 : i32
    %7 = vector.broadcast %c0_i32 : i32 to vector<8x128xi32>
    %8 = arith.cmpi eq, %3, %7 : vector<8x128xi32>
    %cst_6 = arith.constant 0.000000e+00 : f32
    %9 = vector.broadcast %cst_6 : f32 to vector<8x128xf32>
    %10 = arith.select %8, %2, %9 : vector<8x128xi1>, vector<8x128xf32>
    %cst_7 = arith.constant dense<0.000000e+00> : vector<8xf32>
    %11 = vector.multi_reduction <add>, %10, %cst_7 [1] : vector<8x128xf32> to vector<8xf32>
    %12 = vector.shape_cast %11 : vector<8xf32> to vector<8x1xf32>
    %c0_i32_8 = arith.constant 0 : i32
    %13 = vector.broadcast %c0_i32_8 : i32 to vector<1x128xi32>
    %14 = arith.cmpi eq, %4, %13 : vector<1x128xi32>
    %cst_9 = arith.constant 0.000000e+00 : f32
    %15 = vector.broadcast %cst_9 : f32 to vector<1x128xf32>
    %16 = arith.select %14, %5, %15 : vector<1x128xi1>, vector<1x128xf32>
    %cst_10 = arith.constant dense<0.000000e+00> : vector<1xf32>
    %17 = vector.multi_reduction <add>, %16, %cst_10 [1] : vector<1x128xf32> to vector<1xf32>
    %18 = vector.shape_cast %17 : vector<1xf32> to vector<1x1xf32>
    %cst_11 = arith.constant 1.000000e+00 : f32
    %19 = vector.broadcast %cst_11 : f32 to vector<8x1xf32>
    %20 = arith.addf %19, %12 : vector<8x1xf32>
    %21 = arith.mulf %6, %20 : vector<8x1xf32>
    %22 = vector.broadcast %18 : vector<1x1xf32> to vector<8x1xf32>
    %23 = arith.addf %21, %22 : vector<8x1xf32>
    %c1_i32 = arith.constant 1 : i32
    %24 = vector.broadcast %c1_i32 : i32 to vector<8x128xi32>
    %25 = arith.cmpi eq, %3, %24 : vector<8x128xi32>
    %cst_12 = arith.constant 0.000000e+00 : f32
    %26 = vector.broadcast %cst_12 : f32 to vector<8x128xf32>
    %27 = arith.select %25, %2, %26 : vector<8x128xi1>, vector<8x128xf32>
    %cst_13 = arith.constant dense<0.000000e+00> : vector<8xf32>
    %28 = vector.multi_reduction <add>, %27, %cst_13 [1] : vector<8x128xf32> to vector<8xf32>
    %29 = vector.shape_cast %28 : vector<8xf32> to vector<8x1xf32>
    %c1_i32_14 = arith.constant 1 : i32
    %30 = vector.broadcast %c1_i32_14 : i32 to vector<1x128xi32>
    %31 = arith.cmpi eq, %4, %30 : vector<1x128xi32>
    %cst_15 = arith.constant 0.000000e+00 : f32
    %32 = vector.broadcast %cst_15 : f32 to vector<1x128xf32>
    %33 = arith.select %31, %5, %32 : vector<1x128xi1>, vector<1x128xf32>
    %cst_16 = arith.constant dense<0.000000e+00> : vector<1xf32>
    %34 = vector.multi_reduction <add>, %33, %cst_16 [1] : vector<1x128xf32> to vector<1xf32>
    %35 = vector.shape_cast %34 : vector<1xf32> to vector<1x1xf32>
    %cst_17 = arith.constant 1.000000e+00 : f32
    %36 = vector.broadcast %cst_17 : f32 to vector<8x1xf32>
    %37 = arith.addf %36, %29 : vector<8x1xf32>
    %38 = arith.mulf %23, %37 : vector<8x1xf32>
    %39 = vector.broadcast %35 : vector<1x1xf32> to vector<8x1xf32>
    %40 = arith.addf %38, %39 : vector<8x1xf32>
    %c2_i32 = arith.constant 2 : i32
    %41 = vector.broadcast %c2_i32 : i32 to vector<8x128xi32>
    %42 = arith.cmpi eq, %3, %41 : vector<8x128xi32>
    %cst_18 = arith.constant 0.000000e+00 : f32
    %43 = vector.broadcast %cst_18 : f32 to vector<8x128xf32>
    %44 = arith.select %42, %2, %43 : vector<8x128xi1>, vector<8x128xf32>
    %cst_19 = arith.constant dense<0.000000e+00> : vector<8xf32>
    %45 = vector.multi_reduction <add>, %44, %cst_19 [1] : vector<8x128xf32> to vector<8xf32>
    %46 = vector.shape_cast %45 : vector<8xf32> to vector<8x1xf32>
    %c2_i32_20 = arith.constant 2 : i32
    %47 = vector.broadcast %c2_i32_20 : i32 to vector<1x128xi32>
    %48 = arith.cmpi eq, %4, %47 : vector<1x128xi32>
    %cst_21 = arith.constant 0.000000e+00 : f32
    %49 = vector.broadcast %cst_21 : f32 to vector<1x128xf32>
    %50 = arith.select %48, %5, %49 : vector<1x128xi1>, vector<1x128xf32>
    %cst_22 = arith.constant dense<0.000000e+00> : vector<1xf32>
    %51 = vector.multi_reduction <add>, %50, %cst_22 [1] : vector<1x128xf32> to vector<1xf32>
    %52 = vector.shape_cast %51 : vector<1xf32> to vector<1x1xf32>
    %cst_23 = arith.constant 1.000000e+00 : f32
    %53 = vector.broadcast %cst_23 : f32 to vector<8x1xf32>
    %54 = arith.addf %53, %46 : vector<8x1xf32>
    %55 = arith.mulf %40, %54 : vector<8x1xf32>
    %56 = vector.broadcast %52 : vector<1x1xf32> to vector<8x1xf32>
    %57 = arith.addf %55, %56 : vector<8x1xf32>
    %58 = vector.broadcast %57 : vector<8x1xf32> to vector<8x32xf32>
    %59 = arith.mulf %0, %58 : vector<8x32xf32>
    %c0_24 = arith.constant 0 : index
    %c0_25 = arith.constant 0 : index
    %60 = vector.load %arg4[%c0_24, %c0_25] : memref<1x32xf32, #tpu.memory_space<vmem>>, vector<1x32xf32>
    %61 = vector.broadcast %60 : vector<1x32xf32> to vector<8x32xf32>
    %62 = arith.addf %59, %61 : vector<8x32xf32>
    %c0_26 = arith.constant 0 : index
    %c0_27 = arith.constant 0 : index
    %63 = vector.load %arg5[%c0_26, %c0_27] : memref<8x32xf32, #tpu.memory_space<vmem>>, vector<8x32xf32>
    tpu.vector_store %arg5[%c0_26, %c0_27], %62 {strides = array<i32>} : memref<8x32xf32, #tpu.memory_space<vmem>>, vector<8x32xf32>,
    return
  }
  func.func @transform_0(%arg0: i32) -> (i32, i32) {
    %c0_i32 = arith.constant 0 : i32
    %c0_i32_0 = arith.constant 0 : i32
    return %arg0, %c0_i32 : i32, i32
  }
  func.func @transform_1(%arg0: i32) -> (i32, i32) {
    %c0_i32 = arith.constant 0 : i32
    %c0_i32_0 = arith.constant 0 : i32
    %c0_i32_1 = arith.constant 0 : i32
    return %c0_i32, %c0_i32_0 : i32, i32
  }
  func.func @transform_2(%arg0: i32) -> (i32, i32) {
    %c0_i32 = arith.constant 0 : i32
    %c0_i32_0 = arith.constant 0 : i32
    %c0_i32_1 = arith.constant 0 : i32
    return %c0_i32, %c0_i32_0 : i32, i32
  }
  func.func @transform_3(%arg0: i32) -> (i32, i32) {
    %c0_i32 = arith.constant 0 : i32
    %c0_i32_0 = arith.constant 0 : i32
    %c0_i32_1 = arith.constant 0 : i32
    return %c0_i32, %c0_i32_0 : i32, i32
  }
  func.func @transform_4(%arg0: i32) -> (i32, i32) {
    %c0_i32 = arith.constant 0 : i32
    %c0_i32_0 = arith.constant 0 : i32
    return %arg0, %c0_i32 : i32, i32
  }
}

</mosaic_0001>

<llo_original>
// kernel: tpu_custom_call.1
$region0: #{tpu_custom_call.1}
  #allocation0 [shape = 'u32[]', space=smem, size = 0x4, offset = 0x4, fixed_abs, tag = 'smem constant byte address 0x4 - core index']
  #allocation1 [shape = 'u32[72,128]{1,0:T(1,128)}', space=vmem, size = 0x9000, scoped, tag = 'internal scratch']
  %s0 = inlined_call_operand.hbm [shape: f32[16,32], index: 0, kind: input, shape index: {}]
  %s1 = inlined_call_operand.hbm [shape: f32[32,128], index: 1, kind: input, shape index: {}]
  %s2 = inlined_call_operand.vmem [shape: f32[1,128], index: 2, kind: input, shape index: {}]
  %s3 = inlined_call_operand.vmem [shape: f32[1,32], index: 3, kind: input, shape index: {}]
  %s4 = inlined_call_operand.hbm [shape: f32[16,32], index: 4, kind: output, shape index: {}]
  %s5 = sld [smem:[#allocation0]]
  $region57: #{tpu_custom_call.1} parent=0
    _
  %s7 = ssub.s32 1, %s5
  %s8 = scalar_select 0, %s7, %s5
  $region1: #{tpu_custom_call.1} parent=0
    #allocation2 [shape = 'u8[8192]{0}', space=vmem, size = 0x2000, scoped, tag = 'input window, operand 0']
    #allocation3 [shape = 's32[2]{0}', space=sflag, size = 0x8, scoped, tag = 'scoped memory for tpu_custom_call.1']
    #allocation4 [shape = 's32[2]{0}', space=sflag, size = 0x8, scoped, tag = 'scoped memory for tpu_custom_call.1']
    #allocation5 [shape = 'u8[16384]{0}', space=vmem, size = 0x4000, scoped, tag = 'input window, operand 1, single buffered']
    #allocation6 [shape = 's32[1]{0}', space=sflag, size = 0x4, scoped, tag = 'scoped memory for tpu_custom_call.1']
    #allocation7 [shape = 'u8[8192]{0}', space=vmem, size = 0x2000, scoped, tag = 'output window, operand 0']
    %9 = vsyncpa [#allocation3], 0
    %s10 = scalar_lea.sflag [#allocation3], 1
    %11 = vsyncpa %s10, 0
    %12 = vsyncpa [#allocation6], 0
    %13 = vsyncpa [#allocation4], 0
    %s14 = scalar_lea.sflag [#allocation4], 1
    %15 = vsyncpa %s14, 0
    loop: start=0, step=1, limit=4
    $region2: #{tpu_custom_call.1} parent=1 // loop_pre_header
      _
    $region3: #{tpu_custom_call.1} parent=1 // loop_header
      %s17 = sphi 0, %s21
      %p18 = scmp.ge.s32.totalorder %s17, 4
      %s27 = sphi 0, %s29
      %s30 = sphi 0, %s27
      %s31 = sphi 0, %s30
      %s47 = sphi 0, %s31
      %s51 = sphi 0, %s51
      %s53 = sphi 0, %s51
      %s54 = sphi 0, %s53
      %s68 = sphi 0, %s54
      %s72 = sphi 0, %s72
      %s74 = sphi 0, %s72
      %s75 = sphi 0, %s74
      %s89 = sphi 0, %s75
      %s93 = sphi 0, %s93
      %s95 = sphi 0, %s93
      %s96 = sphi 0, %s95
      %s110 = sphi 0, %s96
      %s116 = sphi 0, %s118
      %s119 = sphi 0, %s116
      %s120 = sphi 0, %s119
      %s136 = sphi 0, %s120
    $region4: #{tpu_custom_call.1} parent=1 // loop_header_branch
      %20 = sbr.rel (%p18) target = $region8
    $region5: #{tpu_custom_call.1} parent=1 // loop_body
      %s22 = ssub.s32 %s17, 1
      %s23 = ssub.s32 %s17, 2
      %s24 = sadd.s32 %s17, 1
      %s25 = ssub.s32 %s17, %s24
      %p26 = scmp.eq.s32.totalorder %s25, 0
      %s28 = sadd.s32 %s27, 1
      %s29 = scalar_select %p26, %s27, %s28
      %p32 = pneg %p26
      %p33 = scmp.eq.s32.totalorder %s17, 1
      %p34 = por %p32, %p33
      %p35 = scmp.ne.s32.totalorder %s27, %s30
      %p36 = scmp.eq.s32.totalorder %s17, 0
      %p37 = por %p35, %p36
      %p38 = scmp.ne.s32.totalorder %s27, %s30
      %p39 = scmp.eq.s32.totalorder %s22, 1
      %p40 = por %p38, %p39
      %p41 = scmp.ne.s32.totalorder %s30, %s31
      %p42 = scmp.eq.s32.totalorder %s22, 0
      %p43 = por %p41, %p42
      %p44 = scmp.ne.s32.totalorder %s30, %s31
      %p45 = scmp.eq.s32.totalorder %s23, 1
      %p46 = por %p44, %p45
      %p48 = scmp.ne.s32.totalorder %s31, %s47
      %p49 = scmp.eq.s32.totalorder %s23, 0
      %p50 = por %p48, %p49
      %s52 = sadd.s32 %s51, 1
      %p55 = scmp.eq.s32.totalorder %s17, 1
      %p56 = scmp.ne.s32.totalorder %s51, %s53
      %p57 = scmp.eq.s32.totalorder %s17, 0
      %p58 = por %p56, %p57
      %p59 = scmp.ne.s32.totalorder %s51, %s53
      %p60 = scmp.eq.s32.totalorder %s22, 1
      %p61 = por %p59, %p60
      %p62 = scmp.ne.s32.totalorder %s53, %s54
      %p63 = scmp.eq.s32.totalorder %s22, 0
      %p64 = por %p62, %p63
      %p65 = scmp.ne.s32.totalorder %s53, %s54
      %p66 = scmp.eq.s32.totalorder %s23, 1
      %p67 = por %p65, %p66
      %p69 = scmp.ne.s32.totalorder %s54, %s68
      %p70 = scmp.eq.s32.totalorder %s23, 0
      %p71 = por %p69, %p70
      %s73 = sadd.s32 %s72, 1
      %p76 = scmp.eq.s32.totalorder %s17, 1
      %p77 = scmp.ne.s32.totalorder %s72, %s74
      %p78 = scmp.eq.s32.totalorder %s17, 0
      %p79 = por %p77, %p78
      %p80 = scmp.ne.s32.totalorder %s72, %s74
      %p81 = scmp.eq.s32.totalorder %s22, 1
      %p82 = por %p80, %p81
      %p83 = scmp.ne.s32.totalorder %s74, %s75
      %p84 = scmp.eq.s32.totalorder %s22, 0
      %p85 = por %p83, %p84
      %p86 = scmp.ne.s32.totalorder %s74, %s75
      %p87 = scmp.eq.s32.totalorder %s23, 1
      %p88 = por %p86, %p87
      %p90 = scmp.ne.s32.totalorder %s75, %s89
      %p91 = scmp.eq.s32.totalorder %s23, 0
      %p92 = por %p90, %p91
      %s94 = sadd.s32 %s93, 1
      %p97 = scmp.eq.s32.totalorder %s17, 1
      %p98 = scmp.ne.s32.totalorder %s93, %s95
      %p99 = scmp.eq.s32.totalorder %s17, 0
      %p100 = por %p98, %p99
      %p101 = scmp.ne.s32.totalorder %s93, %s95
      %p102 = scmp.eq.s32.totalorder %s22, 1
      %p103 = por %p101, %p102
      %p104 = scmp.ne.s32.totalorder %s95, %s96
      %p105 = scmp.eq.s32.totalorder %s22, 0
      %p106 = por %p104, %p105
      %p107 = scmp.ne.s32.totalorder %s95, %s96
      %p108 = scmp.eq.s32.totalorder %s23, 1
      %p109 = por %p107, %p108
      %p111 = scmp.ne.s32.totalorder %s96, %s110
      %p112 = scmp.eq.s32.totalorder %s23, 0
      %p113 = por %p111, %p112
      %s114 = ssub.s32 %s17, %s24
      %p115 = scmp.eq.s32.totalorder %s114, 0
      %s117 = sadd.s32 %s116, 1
      %s118 = scalar_select %p115, %s116, %s117
      %p121 = pneg %p115
      %p122 = scmp.eq.s32.totalorder %s17, 1
      %p123 = por %p121, %p122
      %p124 = scmp.ne.s32.totalorder %s116, %s119
      %p125 = scmp.eq.s32.totalorder %s17, 0
      %p126 = por %p124, %p125
      %p127 = scmp.ne.s32.totalorder %s116, %s119
      %p128 = scmp.eq.s32.totalorder %s22, 1
      %p129 = por %p127, %p128
      %p130 = scmp.ne.s32.totalorder %s119, %s120
      %p131 = scmp.eq.s32.totalorder %s22, 0
      %p132 = por %p130, %p131
      %p133 = scmp.ne.s32.totalorder %s119, %s120
      %p134 = scmp.eq.s32.totalorder %s23, 1
      %p135 = por %p133, %p134
      %p137 = scmp.ne.s32.totalorder %s120, %s136
      %p138 = scmp.eq.s32.totalorder %s23, 0
      %p139 = por %p137, %p138
      %p140 = scmp.le.s32.totalorder 1, %s17
      %p141 = scmp.lt.s32.totalorder %s17, 3
      %p142 = pnand %p140, %p141
      %p143 = pneg %p142
      // Predicated region
      $region9: #{tpu_custom_call.1} parent=5 // pred_check
        _
      $region10: #{tpu_custom_call.1} parent=5 // pred_check_branch
        %145 = sbr.rel (%p142) target = $region12
      $region11: #{tpu_custom_call.1} parent=5 // pred_region
        %s146 = ssub.s32 %s17, 1
        // Predicated region
        $region13: #{tpu_custom_call.1} parent=11 // pred_check
          %p147 = pneg %p64
        $region14: #{tpu_custom_call.1} parent=11 // pred_check_branch
          %149 = sbr.rel (%p147) target = $region16
        $region15: #{tpu_custom_call.1} parent=11 // pred_region
          %151 = vsyncadd [#allocation6], 0
          %s152 = sshll.u32 %s1, 4
          %s153 = int_to_ptr.hbm [resolvable:$true] %s152
          %s154 = sshll.u32 [#allocation5], 4
          %s155 = int_to_ptr.vmem [resolvable:$true] %s154
          %160 = dma.hbm_to_vmem [thread:$0]  %s153, 512, %s155, [#allocation6], 128, 128, 8
        $region16: #{tpu_custom_call.1} parent=11 // pred_fallthru
          _
        // Predicated region
        $region17: #{tpu_custom_call.1} parent=11 // pred_check
          %p161 = pneg %p85
        $region18: #{tpu_custom_call.1} parent=11 // pred_check_branch
          %163 = sbr.rel (%p161) target = $region20
        $region19: #{tpu_custom_call.1} parent=11 // pred_region
          _
        $region20: #{tpu_custom_call.1} parent=11 // pred_fallthru
          _
        // Predicated region
        $region21: #{tpu_custom_call.1} parent=11 // pred_check
          %p164 = pneg %p106
        $region22: #{tpu_custom_call.1} parent=11 // pred_check_branch
          %166 = sbr.rel (%p164) target = $region24
        $region23: #{tpu_custom_call.1} parent=11 // pred_region
          _
        $region24: #{tpu_custom_call.1} parent=11 // pred_fallthru
          _
      $region12: #{tpu_custom_call.1} parent=5 // pred_fallthru
        _
      %p167 = scmp.lt.s32.totalorder %s17, 2
      // Predicated region
      $region25: #{tpu_custom_call.1} parent=5 // pred_check
        %p168 = pneg %p167
      $region26: #{tpu_custom_call.1} parent=5 // pred_check_branch
        %170 = sbr.rel (%p168) target = $region28
      $region27: #{tpu_custom_call.1} parent=5 // pred_region
        // Predicated region
        $region29: #{tpu_custom_call.1} parent=27 // pred_check
          %p171 = pneg %p37
        $region30: #{tpu_custom_call.1} parent=27 // pred_check_branch
          %173 = sbr.rel (%p171) target = $region32
        $region31: #{tpu_custom_call.1} parent=27 // pred_region
          %s174 = sand.u32 %s27, 1
          %s175 = scalar_lea.sflag [#allocation3], %s174
          %s176 = sand.u32 %s27, 1
          %s177 = smul.addr %s176, 8
          %s178 = scalar_lea.vmem [#allocation2], %s177
          %180 = vsyncadd %s175, 0
          %s181 = smul.addr %s17, 8
          %s182 = scalar_lea.hbm %s0, %s181
          %s184 = sshll.u32 %s182, 4
          %s185 = int_to_ptr.hbm [resolvable:$true] %s184
          %s186 = sshll.u32 %s178, 4
          %s187 = int_to_ptr.vmem [resolvable:$true] %s186
          %189 = dma.hbm_to_vmem [thread:$0]  %s185, 128, %s187, %s175
        $region32: #{tpu_custom_call.1} parent=27 // pred_fallthru
          _
      $region28: #{tpu_custom_call.1} parent=5 // pred_fallthru
        _
      %p190 = scmp.le.s32.totalorder 1, %s17
      %p191 = scmp.lt.s32.totalorder %s17, 3
      %p192 = pnand %p190, %p191
      %p193 = pneg %p192
      // Predicated region
      $region33: #{tpu_custom_call.1} parent=5 // pred_check
        _
      $region34: #{tpu_custom_call.1} parent=5 // pred_check_branch
        %195 = sbr.rel (%p192) target = $region36
      $region35: #{tpu_custom_call.1} parent=5 // pred_region
        %s196 = ssub.s32 %s17, 1
        %s197 = sand.u32 %s30, 1
        %s198 = scalar_lea.sflag [#allocation3], %s197
        %s199 = sand.u32 %s30, 1
        %s200 = smul.addr %s199, 8
        %s201 = scalar_lea.vmem [#allocation2], %s200
        // Predicated region
        $region37: #{tpu_custom_call.1} parent=35 // pred_check
          %p202 = pneg %p43
        $region38: #{tpu_custom_call.1} parent=35 // pred_check_branch
          %204 = sbr.rel (%p202) target = $region40
        $region39: #{tpu_custom_call.1} parent=35 // pred_region
          %206 = dma.done %s198, 128
        $region40: #{tpu_custom_call.1} parent=35 // pred_fallthru
          _
        // Predicated region
        $region41: #{tpu_custom_call.1} parent=35 // pred_check
          %p207 = pneg %p64
        $region42: #{tpu_custom_call.1} parent=35 // pred_check_branch
          %209 = sbr.rel (%p207) target = $region44
        $region43: #{tpu_custom_call.1} parent=35 // pred_region
          %211 = dma.done [#allocation6], 512
        $region44: #{tpu_custom_call.1} parent=35 // pred_fallthru
          _
        %s212 = sand.u32 %s30, 1
        %s213 = scalar_lea.sflag [#allocation3], %s212
        %s214 = sand.u32 %s30, 1
        %s215 = smul.addr %s214, 8
        %s216 = scalar_lea.vmem [#allocation2], %s215
        %p217 = pneg %p43
        %p218 = pneg %p40
        %p219 = pneg %p64
        %p220 = pneg %p61
        %p221 = pneg %p85
        %p222 = pneg %p82
        %p223 = pneg %p106
        %p224 = pneg %p103
        %p225 = pneg %p132
        %p226 = pneg %p129
        %s227 = sand.u32 %s119, 1
        %s228 = scalar_lea.sflag [#allocation4], %s227
        %s229 = sand.u32 %s119, 1
        %s230 = smul.addr %s229, 8
        %s231 = scalar_lea.vmem [#allocation7], %s230
        %v232 = vld [vmem:[%s201] sm:$0xff]
        %v233 = vld [vmem:[#allocation5] sm:$0xff]
        %v234 = vld [vmem:[#allocation5 + $0x8] sm:$0xff]
        %v235 = vld [vmem:[#allocation5 + $0x10] sm:$0xff]
        %v236 = vld [vmem:[#allocation5 + $0x18] sm:$0xff]
        %vm237 = vcmask 261120
        %v239 = vsel %vm237, %v232, 0
        %241 = vmatpush.msra.mxu0 0.0
        %242 = vmatpush.msra.mxu0 0.0
        %243 = vmatpush.msra.mxu0 0.0
        %244 = vmatpush.msra.mxu0 0.0
        %245 = vmatpush.msra.mxu0 0.0
        %246 = vmatpush.msra.mxu0 0.0
        %247 = vmatpush.msra.mxu0 0.0
        %248 = vmatpush.msra.mxu0 0.0
        %249 = vmatpush.msra.mxu0 0.0
        %250 = vmatpush.msra.mxu0 0.0
        %251 = vmatpush.msra.mxu0 0.0
        %252 = vmatpush.msra.mxu0 0.0
        %253 = vmatpush.msra.mxu0 %v236
        %254 = vmatpush.msra.mxu0 %v235
        %255 = vmatpush.msra.mxu0 %v234
        %256 = vmatpush.msra.mxu0 %v233
        %257 = vmatmul.f32.gmra.mxu0 %v239
        %v258 = vpop.f32.mrf.mxu0
        %v259 = vadd.f32 0.0, %v258
        %260 = vdwg.mxu0
        %v261 = vlaneseq
        %v262 = vand.u32 %v261, 127
        %v263 = vld [vmem:[%s2] sm:$0x1]
        %vm264 = vcmp.eq.s32.totalorder %v262, 0
        %v265 = vsel %vm264, %v259, 0.0
        %266 = vadd.xlane.f32.xlu0 %v265
        %v267 = vpop.xlane.xlu0 %266
        %v268 = vsel %vm264, %v263, 0.0
        %vm269 = vcmask 1040384
        %v270 = vsel %vm269, %v268, 0.0
        %271 = vadd.xlane.f32.xlu0 %v270
        %v272 = vpop.xlane.xlu0 %271
        %v273 = vadd.f32 %v267, 1.0
        %v274 = vperm.slane %v272, 0
        %v275 = vadd.f32 %v273, %v274
        %vm276 = vcmp.eq.s32.totalorder %v262, 1
        %v277 = vsel %vm276, %v259, 0.0
        %278 = vadd.xlane.f32.xlu0 %v277
        %v279 = vpop.xlane.xlu0 %278
        %v280 = vsel %vm276, %v263, 0.0
        %v281 = vsel %vm269, %v280, 0.0
        %282 = vadd.xlane.f32.xlu0 %v281
        %v283 = vpop.xlane.xlu0 %282
        %v284 = vadd.f32 %v279, 1.0
        %v285 = vmul.f32 %v275, %v284
        %v286 = vperm.slane %v283, 0
        %v287 = vadd.f32 %v285, %v286
        %vm288 = vcmp.eq.s32.totalorder %v262, 2
        %v289 = vsel %vm288, %v259, 0.0
        %290 = vadd.xlane.f32.xlu0 %v289
        %v291 = vpop.xlane.xlu0 %290
        %v292 = vsel %vm288, %v263, 0.0
        %v293 = vsel %vm269, %v292, 0.0
        %294 = vadd.xlane.f32.xlu0 %v293
        %v295 = vpop.xlane.xlu0 %294
        %v296 = vadd.f32 %v291, 1.0
        %v297 = vmul.f32 %v287, %v296
        %v298 = vperm.slane %v295, 0
        %v299 = vadd.f32 %v297, %v298
        %v300 = vmul.f32 %v232, %v299
        %v301 = vld [vmem:[%s3] sm:$0x1]
        %v303 = vperm.slane %v301, 0
        %v305 = vadd.f32 %v300, %v303
        %306 = vst.msk [vmem:[%s231] sm:$0xff] %vm237, %v305
        %s307 = sand.u32 %s119, 1
        %s308 = scalar_lea.sflag [#allocation4], %s307
        %s309 = sand.u32 %s119, 1
        %s310 = smul.addr %s309, 8
        %s311 = scalar_lea.vmem [#allocation7], %s310
        // Predicated region
        $region45: #{tpu_custom_call.1} parent=35 // pred_check
          %p312 = pneg %p129
        $region46: #{tpu_custom_call.1} parent=35 // pred_check_branch
          %314 = sbr.rel (%p312) target = $region48
        $region47: #{tpu_custom_call.1} parent=35 // pred_region
          %316 = vsyncadd %s308, 0
          %s317 = smul.addr %s22, 8
          %s318 = scalar_lea.hbm %s4, %s317
          %s320 = sshll.u32 %s311, 4
          %s321 = int_to_ptr.vmem [resolvable:$true] %s320
          %s322 = sshll.u32 %s318, 4
          %s323 = int_to_ptr.hbm [resolvable:$true] %s322
          %325 = dma.vmem_to_hbm [thread:$0]  %s321, 128, %s323, %s308
        $region48: #{tpu_custom_call.1} parent=35 // pred_fallthru
          _
      $region36: #{tpu_custom_call.1} parent=5 // pred_fallthru
        _
      %p326 = scmp.le.s32.totalorder 2, %s17
      // Predicated region
      $region49: #{tpu_custom_call.1} parent=5 // pred_check
        %p327 = pneg %p326
      $region50: #{tpu_custom_call.1} parent=5 // pred_check_branch
        %329 = sbr.rel (%p327) target = $region52
      $region51: #{tpu_custom_call.1} parent=5 // pred_region
        %s330 = ssub.s32 %s17, 2
        // Predicated region
        $region53: #{tpu_custom_call.1} parent=51 // pred_check
          %p331 = pneg %p135
        $region54: #{tpu_custom_call.1} parent=51 // pred_check_branch
          %333 = sbr.rel (%p331) target = $region56
        $region55: #{tpu_custom_call.1} parent=51 // pred_region
          %s334 = sand.u32 %s120, 1
          %s335 = scalar_lea.sflag [#allocation4], %s334
          %s336 = sand.u32 %s120, 1
          %s337 = smul.addr %s336, 8
          %s338 = scalar_lea.vmem [#allocation7], %s337
          %340 = dma.done %s335, 128
        $region56: #{tpu_custom_call.1} parent=51 // pred_fallthru
          _
      $region52: #{tpu_custom_call.1} parent=5 // pred_fallthru
        _
    $region6: #{tpu_custom_call.1} parent=1 // loop_footer
      %s21 = sadd.s32 1, %s17
    $region7: #{tpu_custom_call.1} parent=1 // loop_footer_branch
      %16 = sbr.rel target = $region3
    $region8: #{tpu_custom_call.1} parent=1 // loop_exit
      _
    %341 = vsyncpa [#allocation3], 1
    %s342 = scalar_lea.sflag [#allocation3], 1
    %343 = vsyncpa %s342, 1
    %344 = vsyncpa [#allocation6], 1
    %345 = vsyncpa [#allocation4], 1
    %s346 = scalar_lea.sflag [#allocation4], 1
    %347 = vsyncpa %s346, 1

</llo_original>
